<compile_context>
chip_gen: v7x
topology: tpu7x:2x2x1
jax: 0.10.0
libtpu: 0.0.40
codegen_flags: <defaults>
</compile_context>

<pallas_src>
import functools

import jax
import jax.numpy as jnp
from jax import lax
from jax.experimental import pallas as pl
from jax.experimental.pallas import tpu as pltpu


# ----------------------------- Pallas kernels -----------------------------

def _maxpool_kernel(x_ref, o_ref):
    """x_ref: (P, L) stacked pool-window slices (L lane-dense).
    Single grid step: sublane max-reduce over the P window offsets."""
    o_ref[...] = jnp.max(x_ref[...], axis=0, keepdims=True)


def _conv1_skip_kernel(*refs, residual, eps):
    """conv1 + BN1(batch stats) + ReLU, fused with the residual skip conv.

    Both convs read the same folded im2col slab x_ref (K1, M) (bf16); each is
    a single MXU matmul with a lane-dense (Cout, M) result."""
    if residual:
        x_ref, w1_ref, ws_ref, g1_ref, b1_ref, y1_ref, skip_ref = refs
    else:
        x_ref, w1_ref, g1_ref, b1_ref, y1_ref = refs

    x = x_ref[...]                                                 # (K1, M) bf16
    acc = jnp.dot(w1_ref[...], x, preferred_element_type=jnp.float32)  # (Cout, M) f32

    # BatchNorm3d, training mode: per-channel stats over all M = N*D*H*W rows.
    mean = jnp.mean(acc, axis=1, keepdims=True)
    var = jnp.mean((acc - mean) ** 2, axis=1, keepdims=True)
    y = (acc - mean) * lax.rsqrt(var + eps)
    y = y * g1_ref[...] + b1_ref[...]
    y = jnp.maximum(y, 0.0)
    y1_ref[...] = y.astype(y1_ref.dtype)

    if residual:
        skip_ref[...] = jnp.dot(ws_ref[...], x,
                                preferred_element_type=jnp.float32)


def _conv2_kernel(*refs, residual, eps):
    """conv2 + BN2(batch stats) [+ skip add] + ReLU, lane-dense (Cout, M) out."""
    if residual:
        x_ref, w2_ref, g2_ref, b2_ref, skip_ref, o_ref = refs
    else:
        x_ref, w2_ref, g2_ref, b2_ref, o_ref = refs

    acc = jnp.dot(w2_ref[...], x_ref[...],
                  preferred_element_type=jnp.float32)              # (Cout, M) f32
    mean = jnp.mean(acc, axis=1, keepdims=True)
    var = jnp.mean((acc - mean) ** 2, axis=1, keepdims=True)
    y = (acc - mean) * lax.rsqrt(var + eps)
    y = y * g2_ref[...] + b2_ref[...]
    if residual:
        y = y + skip_ref[...]
    o_ref[...] = jnp.maximum(y, 0.0).astype(o_ref.dtype)


# ------------------------------- wrappers ----------------------------------

_VMEM = pl.BlockSpec(memory_space=pltpu.MemorySpace.VMEM)


def maxpool3d_ncdhw(x, pool):
    """MaxPool3d(kernel=stride=pool, no padding) on NCDHW input."""
    N, C, D, H, W = x.shape
    Do, Ho, Wo = D // pool, H // pool, W // pool
    L = N * C * Do * Ho * Wo
    xr = x[:, :, :Do * pool, :Ho * pool, :Wo * pool]
    xr = xr.reshape(N, C, Do, pool, Ho, pool, Wo, pool)
    xr = jnp.transpose(xr, (3, 5, 7, 0, 1, 2, 4, 6)).reshape(pool ** 3, L)
    out = pl.pallas_call(
        _maxpool_kernel,
        out_shape=jax.ShapeDtypeStruct((1, L), x.dtype),
        in_specs=[_VMEM],
        out_specs=_VMEM,
    )(xr)
    return out.reshape(N, C, Do, Ho, Wo)


def _im2col_t(x_cf, k):
    """Channels-first (C, N, D, H, W) -> folded im2col (k^3*C, N*D*H*W).

    Row index ordering is tap-major (t = kd*k*k + kh*k + kw), channel-minor,
    matching _fold_weight.  Padding = k//2 ('same', stride 1)."""
    C, N, D, H, W = x_cf.shape
    pad = k // 2
    M = N * D * H * W
    xp = jnp.pad(x_cf, ((0, 0), (0, 0), (pad, pad), (pad, pad), (pad, pad)))
    cols = []
    for kd in range(k):
        for kh in range(k):
            for kw in range(k):
                cols.append(
                    xp[:, :, kd:kd + D, kh:kh + H, kw:kw + W].reshape(C, M))
    return jnp.concatenate(cols, axis=0)                   # (k^3*C, M)


def _fold_weight(w):
    """PyTorch (Cout, Cin, kd, kh, kw) -> (Cout, k^3*Cin), tap-major K axis."""
    Cout = w.shape[0]
    return jnp.transpose(w, (0, 2, 3, 4, 1)).reshape(Cout, -1)


def u_block_forward(x_ncdhw, params, *, pool, residual, eps=1e-5):
    """U_block.forward: maxpool -> conv_block (NCDHW in, NCDHW out)."""
    N, Cin, D, H, W = x_ncdhw.shape
    Cout = params['w1'].shape[0]
    k = params['w1'].shape[2]

    # 1) MaxPool3d.
    p = maxpool3d_ncdhw(x_ncdhw, pool)                     # (N, Cin, Dp, Hp, Wp)
    _, _, Dp, Hp, Wp = p.shape
    M = N * Dp * Hp * Wp

    # 2) conv1 (+BN1+ReLU) fused with the residual skip conv.
    x_cf = jnp.transpose(p, (1, 0, 2, 3, 4)).astype(jnp.bfloat16)
    x1 = _im2col_t(x_cf, k)                                # (k^3*Cin, M) bf16
    w1 = _fold_weight(params['w1']).astype(jnp.bfloat16)   # (Cout, k^3*Cin)
    g1 = params['g1'].reshape(Cout, 1).astype(jnp.float32)
    b1 = params['b1'].reshape(Cout, 1).astype(jnp.float32)

    kern1 = functools.partial(_conv1_skip_kernel, residual=residual, eps=eps)
    if residual:
        ws = _fold_weight(params['ws']).astype(jnp.bfloat16)
        y1, skip = pl.pallas_call(
            kern1,
            out_shape=(jax.ShapeDtypeStruct((Cout, M), jnp.bfloat16),
                       jax.ShapeDtypeStruct((Cout, M), jnp.float32)),
            in_specs=[_VMEM] * 5,
            out_specs=(_VMEM, _VMEM),
        )(x1, w1, ws, g1, b1)
    else:
        skip = None
        y1 = pl.pallas_call(
            kern1,
            out_shape=jax.ShapeDtypeStruct((Cout, M), jnp.bfloat16),
            in_specs=[_VMEM] * 4,
            out_specs=_VMEM,
        )(x1, w1, g1, b1)

    # 3) conv2 + BN2 (+ skip) + ReLU on the folded im2col of y1.
    y1_cf = y1.reshape(Cout, N, Dp, Hp, Wp)                # already channels-first
    x2 = _im2col_t(y1_cf, k)                               # (k^3*Cout, M) bf16
    w2 = _fold_weight(params['w2']).astype(jnp.bfloat16)
    g2 = params['g2'].reshape(Cout, 1).astype(jnp.float32)
    b2 = params['b2'].reshape(Cout, 1).astype(jnp.float32)

    kern2 = functools.partial(_conv2_kernel, residual=residual, eps=eps)
    ins = (x2, w2, g2, b2) + ((skip,) if residual else ())
    out = pl.pallas_call(
        kern2,
        out_shape=jax.ShapeDtypeStruct((Cout, M), jnp.float32),
        in_specs=[_VMEM] * len(ins),
        out_specs=_VMEM,
    )(*ins)

    out = out.reshape(Cout, N, Dp, Hp, Wp)
    return jnp.transpose(out, (1, 0, 2, 3, 4))             # -> NCDHW


# ------------------------ pure-JAX reference (check) ------------------------

def reference_forward(x, params, *, pool, residual, eps=1e-5):
    xp = lax.reduce_window(x, -jnp.inf, lax.max,
                           (1, 1, pool, pool, pool),
                           (1, 1, pool, pool, pool), 'VALID')

    def conv(a, w):
        k = w.shape[2]
        pad = k // 2
        return lax.conv_general_dilated(
            a, w, window_strides=(1, 1, 1), padding=[(pad, pad)] * 3,
            dimension_numbers=('NCDHW', 'OIDHW', 'NCDHW'))

    def bn(a, g, b):
        mean = jnp.mean(a, axis=(0, 2, 3, 4), keepdims=True)
        var = jnp.mean((a - mean) ** 2, axis=(0, 2, 3, 4), keepdims=True)
        ah = (a - mean) * lax.rsqrt(var + eps)
        return ah * g.reshape(1, -1, 1, 1, 1) + b.reshape(1, -1, 1, 1, 1)

    y = jnp.maximum(bn(conv(xp, params['w1']), params['g1'], params['b1']), 0.)
    y = bn(conv(y, params['w2']), params['g2'], params['b2'])
    if residual:
        y = y + conv(xp, params['ws'])
    return jnp.maximum(y, 0.0)


# ----------------------------------- main -----------------------------------

if __name__ == "__main__":
    # U_block(ndim=3, in_ch=4, out_ch=8, kernel_size=3, stride=1,
    #         bias=False, residual=True, pool_size=2)
    N, Cin, Cout = 2, 4, 8
    D, H, W = 8, 16, 16
    k, pool, residual = 3, 2, True

    key = jax.random.PRNGKey(0)
    k1, k2, k3, k4 = jax.random.split(key, 4)
    x = jax.random.normal(k1, (N, Cin, D, H, W), jnp.float32)
    params = dict(
        w1=0.1 * jax.random.normal(k2, (Cout, Cin, k, k, k), jnp.float32),
        w2=0.1 * jax.random.normal(k3, (Cout, Cout, k, k, k), jnp.float32),
        ws=0.1 * jax.random.normal(k4, (Cout, Cin, k, k, k), jnp.float32),
        g1=jnp.ones((Cout,), jnp.float32), b1=jnp.zeros((Cout,), jnp.float32),
        g2=jnp.ones((Cout,), jnp.float32), b2=jnp.zeros((Cout,), jnp.float32),
    )

    out = u_block_forward(x, params, pool=pool, residual=residual)
    out = jax.block_until_ready(out)

    ref = reference_forward(x, params, pool=pool, residual=residual)
    assert out.shape == ref.shape == (N, Cout, D // pool, H // pool, W // pool)
    err = float(jnp.max(jnp.abs(out - ref)))
    # bf16 MXU operands (f32 accumulation) -> tolerance loosened accordingly.
    assert jnp.allclose(out, ref, atol=5e-2, rtol=5e-2), f"max abs err {err}"
    print("KERNEL_OK")
</pallas_src>

<mosaic_0001>
module attributes {stable_mosaic.version = 11 : i64} {
  func.func @_maxpool_kernel(%arg0: memref<8x2048xf32, #tpu.memory_space<vmem>>, %arg1: memref<1x2048xf32, #tpu.memory_space<vmem>>) attributes {dimension_semantics = [], scalar_prefetch = 0 : i64, scratch_operands = 0 : i64, tpu.core_type = #tpu.core_type<tc>} {
    %c0 = arith.constant 0 : index
    %c0_0 = arith.constant 0 : index
    %0 = vector.load %arg0[%c0, %c0_0] : memref<8x2048xf32, #tpu.memory_space<vmem>>, vector<8x2048xf32>
    %cst = arith.constant dense<0xFF800000> : vector<2048xf32>
    %1 = vector.multi_reduction <maximumf>, %0, %cst [0] : vector<8x2048xf32> to vector<2048xf32>
    %2 = vector.shape_cast %1 : vector<2048xf32> to vector<1x2048xf32>
    %c0_1 = arith.constant 0 : index
    %c0_2 = arith.constant 0 : index
    %3 = vector.load %arg1[%c0_1, %c0_2] : memref<1x2048xf32, #tpu.memory_space<vmem>>, vector<1x2048xf32>
    tpu.vector_store %arg1[%c0_1, %c0_2], %2 {strides = array<i32>} : memref<1x2048xf32, #tpu.memory_space<vmem>>, vector<1x2048xf32>,
    return
  }
}

</mosaic_0001>

<llo_original>
// kernel: tpu_custom_call.1
$region0: #{tpu_custom_call.1}
  #allocation0 [shape = 'u32[]', space=smem, size = 0x4, offset = 0x4, fixed_abs, tag = 'smem constant byte address 0x4 - core index']
  #allocation1 [shape = 'u32[144,128]{1,0:T(1,128)}', space=vmem, size = 0x12000, scoped, tag = 'internal scratch']
  %s0 = inlined_call_operand.hbm [shape: f32[8,2048], index: 0, kind: input, shape index: {}]
  %s1 = inlined_call_operand.hbm [shape: f32[1,2048], index: 1, kind: output, shape index: {}]
  %s2 = sld [smem:[#allocation0]]
  $region18: #{tpu_custom_call.1} parent=0
    _
  %s4 = ssub.s32 1, %s2
  %s5 = scalar_select 0, %s4, %s2
  $region1: #{tpu_custom_call.1} parent=0
    #allocation2 [shape = 'u8[65536]{0}', space=vmem, size = 0x10000, scoped, tag = 'input window, operand 0, single buffered']
    #allocation3 [shape = 's32[1]{0}', space=sflag, size = 0x4, scoped, tag = 'scoped memory for tpu_custom_call.1']
    #allocation4 [shape = 's32[1]{0}', space=sflag, size = 0x4, scoped, tag = 'scoped memory for tpu_custom_call.1']
    #allocation5 [shape = 'u8[8192]{0}', space=vmem, size = 0x2000, scoped, tag = 'output window, operand 0, single buffered']
    %6 = vsyncpa [#allocation3], 0
    %7 = vsyncpa [#allocation4], 0
    // Predicated region
    $region2: #{tpu_custom_call.1} parent=1 // pred_check
      _
    $region3: #{tpu_custom_call.1} parent=1 // pred_check_branch
      %9 = sbr.rel (0) target = $region5
    $region4: #{tpu_custom_call.1} parent=1 // pred_region
      %s11 = ssub.s32 2048, 2048
      %12 = vsyncadd [#allocation3], %s11
      %s14 = sshll.u32 [#allocation2], 4
      %s15 = int_to_ptr.vmem [resolvable:$true] %s14
      %17 = dma.hbm_to_vmem [thread:$0]  %s0, 2048, %s15, [#allocation3]
    $region5: #{tpu_custom_call.1} parent=1 // pred_fallthru
      _
    // Predicated region
    $region6: #{tpu_custom_call.1} parent=1 // pred_check
      _
    $region7: #{tpu_custom_call.1} parent=1 // pred_check_branch
      %19 = sbr.rel (0) target = $region9
    $region8: #{tpu_custom_call.1} parent=1 // pred_region
      %20 = dma.done [#allocation3], 2048
    $region9: #{tpu_custom_call.1} parent=1 // pred_fallthru
      _
    %v21 = vld [vmem:[#allocation2] sm:$0xff]
    %v22 = vld [vmem:[#allocation2 + $0x8] sm:$0xff]
    %v23 = vld [vmem:[#allocation2 + $0x10] sm:$0xff]
    %v24 = vld [vmem:[#allocation2 + $0x18] sm:$0xff]
    %v25 = vld [vmem:[#allocation2 + $0x20] sm:$0xff]
    %v26 = vld [vmem:[#allocation2 + $0x28] sm:$0xff]
    %v27 = vld [vmem:[#allocation2 + $0x30] sm:$0xff]
    %v28 = vld [vmem:[#allocation2 + $0x38] sm:$0xff]
    %v29 = vld [vmem:[#allocation2 + $0x40] sm:$0xff]
    %v30 = vld [vmem:[#allocation2 + $0x48] sm:$0xff]
    %v31 = vld [vmem:[#allocation2 + $0x50] sm:$0xff]
    %v32 = vld [vmem:[#allocation2 + $0x58] sm:$0xff]
    %v33 = vld [vmem:[#allocation2 + $0x60] sm:$0xff]
    %v34 = vld [vmem:[#allocation2 + $0x68] sm:$0xff]
    %v35 = vld [vmem:[#allocation2 + $0x70] sm:$0xff]
    %v36 = vld [vmem:[#allocation2 + $0x78] sm:$0xff]
    %v37 = vrot.slane %v21, 4
    %v38 = vmax.f32 %v21, %v37
    %v39 = vrot.slane %v38, 2
    %v40 = vmax.f32 %v38, %v39
    %v41 = vrot.slane %v40, 1
    %v42 = vmax.f32 %v40, %v41
    %v43 = vrot.slane %v22, 4
    %v44 = vmax.f32 %v22, %v43
    %v45 = vrot.slane %v44, 2
    %v46 = vmax.f32 %v44, %v45
    %v47 = vrot.slane %v46, 1
    %v48 = vmax.f32 %v46, %v47
    %v49 = vrot.slane %v23, 4
    %v50 = vmax.f32 %v23, %v49
    %v51 = vrot.slane %v50, 2
    %v52 = vmax.f32 %v50, %v51
    %v53 = vrot.slane %v52, 1
    %v54 = vmax.f32 %v52, %v53
    %v55 = vrot.slane %v24, 4
    %v56 = vmax.f32 %v24, %v55
    %v57 = vrot.slane %v56, 2
    %v58 = vmax.f32 %v56, %v57
    %v59 = vrot.slane %v58, 1
    %v60 = vmax.f32 %v58, %v59
    %v61 = vrot.slane %v25, 4
    %v62 = vmax.f32 %v25, %v61
    %v63 = vrot.slane %v62, 2
    %v64 = vmax.f32 %v62, %v63
    %v65 = vrot.slane %v64, 1
    %v66 = vmax.f32 %v64, %v65
    %v67 = vrot.slane %v26, 4
    %v68 = vmax.f32 %v26, %v67
    %v69 = vrot.slane %v68, 2
    %v70 = vmax.f32 %v68, %v69
    %v71 = vrot.slane %v70, 1
    %v72 = vmax.f32 %v70, %v71
    %v73 = vrot.slane %v27, 4
    %v74 = vmax.f32 %v27, %v73
    %v75 = vrot.slane %v74, 2
    %v76 = vmax.f32 %v74, %v75
    %v77 = vrot.slane %v76, 1
    %v78 = vmax.f32 %v76, %v77
    %v79 = vrot.slane %v28, 4
    %v80 = vmax.f32 %v28, %v79
    %v81 = vrot.slane %v80, 2
    %v82 = vmax.f32 %v80, %v81
    %v83 = vrot.slane %v82, 1
    %v84 = vmax.f32 %v82, %v83
    %v85 = vrot.slane %v29, 4
    %v86 = vmax.f32 %v29, %v85
    %v87 = vrot.slane %v86, 2
    %v88 = vmax.f32 %v86, %v87
    %v89 = vrot.slane %v88, 1
    %v90 = vmax.f32 %v88, %v89
    %v91 = vrot.slane %v30, 4
    %v92 = vmax.f32 %v30, %v91
    %v93 = vrot.slane %v92, 2
    %v94 = vmax.f32 %v92, %v93
    %v95 = vrot.slane %v94, 1
    %v96 = vmax.f32 %v94, %v95
    %v97 = vrot.slane %v31, 4
    %v98 = vmax.f32 %v31, %v97
    %v99 = vrot.slane %v98, 2
    %v100 = vmax.f32 %v98, %v99
    %v101 = vrot.slane %v100, 1
    %v102 = vmax.f32 %v100, %v101
    %v103 = vrot.slane %v32, 4
    %v104 = vmax.f32 %v32, %v103
    %v105 = vrot.slane %v104, 2
    %v106 = vmax.f32 %v104, %v105
    %v107 = vrot.slane %v106, 1
    %v108 = vmax.f32 %v106, %v107
    %v109 = vrot.slane %v33, 4
    %v110 = vmax.f32 %v33, %v109
    %v111 = vrot.slane %v110, 2
    %v112 = vmax.f32 %v110, %v111
    %v113 = vrot.slane %v112, 1
    %v114 = vmax.f32 %v112, %v113
    %v115 = vrot.slane %v34, 4
    %v116 = vmax.f32 %v34, %v115
    %v117 = vrot.slane %v116, 2
    %v118 = vmax.f32 %v116, %v117
    %v119 = vrot.slane %v118, 1
    %v120 = vmax.f32 %v118, %v119
    %v121 = vrot.slane %v35, 4
    %v122 = vmax.f32 %v35, %v121
    %v123 = vrot.slane %v122, 2
    %v124 = vmax.f32 %v122, %v123
    %v125 = vrot.slane %v124, 1
    %v126 = vmax.f32 %v124, %v125
    %v127 = vrot.slane %v36, 4
    %v128 = vmax.f32 %v36, %v127
    %v129 = vrot.slane %v128, 2
    %v130 = vmax.f32 %v128, %v129
    %v131 = vrot.slane %v130, 1
    %v132 = vmax.f32 %v130, %v131
    %v149 = vcombine.low %v42, %v48
    %v150 = vcombine.low %v54, %v60
    %v151 = vcombine.low %v66, %v72
    %v152 = vcombine.low %v78, %v84
    %v154 = vunpack.c.l.s4 1966171168
    %v155 = vunpack.c.0.s8 %v154
    %v156 = vlaneseq
    %v157 = vshrl.u32 %v156, 7
    %v158 = vsub.s32 %v155, %v157
    %v159 = vrot.slane %v149, %v158
    %v161 = vunpack.c.l.s4 1966171168
    %v162 = vunpack.c.0.s8 %v161
    %v163 = vlaneseq
    %v164 = vshrl.u32 %v163, 7
    %v165 = vsub.s32 %v162, %v164
    %v166 = vrot.slane %v150, %v165
    %v168 = vunpack.c.l.s4 1966171168
    %v169 = vunpack.c.0.s8 %v168
    %v170 = vlaneseq
    %v171 = vshrl.u32 %v170, 7
    %v172 = vsub.s32 %v169, %v171
    %v173 = vrot.slane %v151, %v172
    %v175 = vunpack.c.l.s4 1966171168
    %v176 = vunpack.c.0.s8 %v175
    %v177 = vlaneseq
    %v178 = vshrl.u32 %v177, 7
    %v179 = vsub.s32 %v176, %v178
    %v180 = vrot.slane %v152, %v179
    %v181 = vcombine.low %v159, %v166
    %v182 = vcombine.low %v173, %v180
    %v184 = vunpack.c.l.s4 1966171168
    %v185 = vunpack.c.0.s8 %v184
    %v186 = vlaneseq
    %v187 = vshrl.u32 %v186, 7
    %v188 = vsub.s32 %v185, %v187
    %v189 = vrot.slane %v181, %v188
    %v191 = vunpack.c.l.s4 1966171168
    %v192 = vunpack.c.0.s8 %v191
    %v193 = vlaneseq
    %v194 = vshrl.u32 %v193, 7
    %v195 = vsub.s32 %v192, %v194
    %v196 = vrot.slane %v182, %v195
    %v197 = vcombine.low %v189, %v196
    %v198 = vcombine.low %v90, %v96
    %v199 = vcombine.low %v102, %v108
    %v200 = vcombine.low %v114, %v120
    %v201 = vcombine.low %v126, %v132
    %v203 = vunpack.c.l.s4 1966171168
    %v204 = vunpack.c.0.s8 %v203
    %v205 = vlaneseq
    %v206 = vshrl.u32 %v205, 7
    %v207 = vsub.s32 %v204, %v206
    %v208 = vrot.slane %v198, %v207
    %v210 = vunpack.c.l.s4 1966171168
    %v211 = vunpack.c.0.s8 %v210
    %v212 = vlaneseq
    %v213 = vshrl.u32 %v212, 7
    %v214 = vsub.s32 %v211, %v213
    %v215 = vrot.slane %v199, %v214
    %v217 = vunpack.c.l.s4 1966171168
    %v218 = vunpack.c.0.s8 %v217
    %v219 = vlaneseq
    %v220 = vshrl.u32 %v219, 7
    %v221 = vsub.s32 %v218, %v220
    %v222 = vrot.slane %v200, %v221
    %v224 = vunpack.c.l.s4 1966171168
    %v225 = vunpack.c.0.s8 %v224
    %v226 = vlaneseq
    %v227 = vshrl.u32 %v226, 7
    %v228 = vsub.s32 %v225, %v227
    %v229 = vrot.slane %v201, %v228
    %v230 = vcombine.low %v208, %v215
    %v231 = vcombine.low %v222, %v229
    %v233 = vunpack.c.l.s4 1966171168
    %v234 = vunpack.c.0.s8 %v233
    %v235 = vlaneseq
    %v236 = vshrl.u32 %v235, 7
    %v237 = vsub.s32 %v234, %v236
    %v238 = vrot.slane %v230, %v237
    %v240 = vunpack.c.l.s4 1966171168
    %v241 = vunpack.c.0.s8 %v240
    %v242 = vlaneseq
    %v243 = vshrl.u32 %v242, 7
    %v244 = vsub.s32 %v241, %v243
    %v245 = vrot.slane %v231, %v244
    %v246 = vcombine.low %v238, %v245
    %249 = vst [vmem:[#allocation5] sm:$0xff] %v197
    %250 = vst [vmem:[#allocation5 + $0x8] sm:$0xff] %v246
    // Predicated region
    $region10: #{tpu_custom_call.1} parent=1 // pred_check
      _
    $region11: #{tpu_custom_call.1} parent=1 // pred_check_branch
      %252 = sbr.rel (0) target = $region13
    $region12: #{tpu_custom_call.1} parent=1 // pred_region
      %s254 = ssub.s32 256, 256
      %255 = vsyncadd [#allocation4], %s254
      %s257 = sshll.u32 [#allocation5], 4
      %s258 = int_to_ptr.vmem [resolvable:$true] %s257
      %260 = dma.vmem_to_hbm [thread:$0]  %s258, 256, %s1, [#allocation4]
    $region13: #{tpu_custom_call.1} parent=1 // pred_fallthru
      _
    // Predicated region
    $region14: #{tpu_custom_call.1} parent=1 // pred_check
      _
    $region15: #{tpu_custom_call.1} parent=1 // pred_check_branch
      %262 = sbr.rel (0) target = $region17
    $region16: #{tpu_custom_call.1} parent=1 // pred_region
      %263 = dma.done [#allocation4], 256
    $region17: #{tpu_custom_call.1} parent=1 // pred_fallthru
      _
    %264 = vsyncpa [#allocation3], 1
    %265 = vsyncpa [#allocation4], 1

</llo_original>
